<compile_context>
chip_gen: v5e
topology: v5e:2x2
jax: 0.10.0
libtpu: 0.0.40
codegen_flags: <defaults>
</compile_context>

<pallas_src>
import jax
import jax.numpy as jnp
from jax import lax
from jax.experimental import pallas as pl
from jax.experimental.pallas import tpu as pltpu


def _laftr_forward_y_kernel(x_ref,            # (TB, XDIM)  batch-major x tile
                            w1_ref, b1_ref,   # encoder L0:    (ENC_H, XDIM), (ENC_H, 1)
                            w2_ref, b2_ref,   # encoder L1:    (ZDIM,  ENC_H), (ZDIM, 1)
                            w3_ref, b3_ref,   # prediction L0: (PRED_H, ZDIM), (PRED_H, 1)
                            w4_ref, b4_ref,   # prediction L1: (YDIM, PRED_H), (YDIM, 1)
                            y_ref):           # (YDIM, TB)  feature-major, lane-dense
    # Cast the streamed activation tile in-kernel (free on the VPU); with the
    # default f32 matmul dtype this is a no-op.
    x = x_ref[...].astype(w1_ref.dtype)                              # (TB, XDIM)

    # --- encoder MLP: Linear -> ReLU -> Linear (no activation on last layer) ---
    # Contract W1's in-dim with x's feature dim: (ENC_H, XDIM) x (TB, XDIM)^T.
    # Result is feature-major (ENC_H, TB): batch lands on the 128-lane axis and
    # stays there for every subsequent op and the output store.
    h = lax.dot_general(w1_ref[...], x, (((1,), (1,)), ((), ())),
                        preferred_element_type=jnp.float32) + b1_ref[...]
    h = jnp.maximum(h, 0.0)
    z_pre = jnp.dot(w2_ref[...], h.astype(w2_ref.dtype),
                    preferred_element_type=jnp.float32) + b2_ref[...]

    # --- forward_z: relu(encoder(x)) ---
    z = jnp.maximum(z_pre, 0.0)

    # --- prediction MLP: Linear -> ReLU -> Linear ---
    p = jnp.dot(w3_ref[...], z.astype(w3_ref.dtype),
                preferred_element_type=jnp.float32) + b3_ref[...]
    p = jnp.maximum(p, 0.0)
    logits = jnp.dot(w4_ref[...], p.astype(w4_ref.dtype),
                     preferred_element_type=jnp.float32) + b4_ref[...]

    # --- exact sigmoid epilogue (the kernel is DMA-bound; EUP/VALU have slack) ---
    y_ref[...] = 1.0 / (1.0 + jnp.exp(-logits))


def _round_up(a, m):
    return ((a + m - 1) // m) * m


def _choose_batch_tile(B, requested=None):
    """Adaptive batch tile: multi-MB x tiles, >=2 grid steps for large B (v7x
    megacore), 128-lane aligned; capped at 64K. Full-extent single block for
    small B."""
    if requested is not None:
        tb = int(requested)
    else:
        tb = _round_up(max(pl.cdiv(B, 2), 128), 128)
        tb = min(tb, 65536)
    if tb >= B:
        return B                      # single full-extent block
    return _round_up(tb, 128)         # aligned tile (covers the 8-sublane rule too)


def laftr_forward_y(x, params, *, batch_tile=None, matmul_dtype=jnp.float32):
    """LAFTR.forward_y.

    x:      (B, XDIM) float32, PyTorch batch-major layout (streamed as-is).
    params: PyTorch nn.Linear layout: w_i (out, in), b_i (out, 1).
    Returns (B, YDIM) float32 sigmoid outputs.
    """
    B, xdim = x.shape
    enc_h = params["w1"].shape[0]
    zdim = params["w2"].shape[0]
    pred_h = params["w3"].shape[0]
    ydim = params["w4"].shape[0]

    tb = _choose_batch_tile(B, batch_tile)
    nb = pl.cdiv(B, tb)

    # Only the tiny, VMEM-resident weights are cast in the wrapper; biases stay
    # f32 (added on f32 accumulators). x is NOT touched in the wrapper.
    weights = tuple(params[f"w{i}"].astype(matmul_dtype) for i in range(1, 5))
    biases = tuple(params[f"b{i}"].astype(jnp.float32) for i in range(1, 5))

    def resident(a):
        # Constant index_map -> DMA'd to VMEM once, stays resident across steps.
        return pl.BlockSpec(a.shape, lambda i: (0, 0))

    in_specs = [pl.BlockSpec((tb, xdim), lambda i: (i, 0))]
    args = [x]
    for w, b in zip(weights, biases):
        in_specs += [resident(w), resident(b)]
        args += [w, b]
    # TODO(synk): weight/bias blocks could be single-buffered (pl.Buffered(1))
    # to trim a few tiny DMA descriptors; skipped as a negligible, riskier win.

    # VMEM budget: double-buffered x/out tiles + (double-buffered) weights/biases
    # + headroom. Kept well below v7x's 64 MiB physical per-core VMEM.
    x_tile_bytes = tb * xdim * x.dtype.itemsize
    out_tile_bytes = ydim * tb * 4
    wb_bytes = sum(int(a.size) * a.dtype.itemsize for a in weights + biases)
    vmem_limit = 2 * (x_tile_bytes + out_tile_bytes) + 2 * wb_bytes + (8 << 20)
    vmem_limit = int(min(max(vmem_limit, 16 << 20), 48 << 20))

    flops = 2 * B * (xdim * enc_h + enc_h * zdim + zdim * pred_h + pred_h * ydim)
    bytes_accessed = (int(x.size) * x.dtype.itemsize
                      + wb_bytes
                      + B * ydim * 4)

    y_fm = pl.pallas_call(
        _laftr_forward_y_kernel,
        out_shape=jax.ShapeDtypeStruct((ydim, B), jnp.float32),
        grid=(nb,),
        in_specs=in_specs,
        out_specs=pl.BlockSpec((ydim, tb), lambda i: (0, i)),
        compiler_params=pltpu.CompilerParams(
            dimension_semantics=("parallel",),
            vmem_limit_bytes=vmem_limit,
        ),
        cost_estimate=pl.CostEstimate(
            flops=int(flops),
            transcendentals=int(B * ydim),
            bytes_accessed=int(bytes_accessed),
        ),
    )(*args)

    # Output is tiny (B * ydim floats); transposing it back is negligible.
    return y_fm.T                                                   # (B, YDIM)


def init_params(key, xdim, enc_hidden, zdim, pred_hidden, ydim):
    """Deterministic init, PyTorch nn.Linear-like uniform(-1/sqrt(fan_in), +).

    Weights in PyTorch-native (out_features, in_features) layout; bias (out, 1).
    """
    dims = [(xdim, enc_hidden), (enc_hidden, zdim), (zdim, pred_hidden), (pred_hidden, ydim)]
    params = {}
    for i, (fi, fo) in enumerate(dims, start=1):
        key, kw, kb = jax.random.split(key, 3)
        bound = 1.0 / jnp.sqrt(fi)
        params[f"w{i}"] = jax.random.uniform(kw, (fo, fi), jnp.float32, -bound, bound)
        params[f"b{i}"] = jax.random.uniform(kb, (fo, 1), jnp.float32, -bound, bound)
    return params


def laftr_forward_y_ref(x, p):
    """Pure-JAX reference (batch-major, exact f32 matmuls, exact sigmoid)."""
    with jax.default_matmul_precision("highest"):
        h = jnp.maximum(x @ p["w1"].T + p["b1"].T, 0.0)
        z = jnp.maximum(h @ p["w2"].T + p["b2"].T, 0.0)   # encoder last layer + forward_z relu
        q = jnp.maximum(z @ p["w3"].T + p["b3"].T, 0.0)
        return jax.nn.sigmoid(q @ p["w4"].T + p["b4"].T)


if __name__ == "__main__":
    # small config consistent with the module
    B, XDIM, ENC_H, ZDIM, PRED_H, YDIM = 8, 16, 32, 8, 32, 1

    key = jax.random.PRNGKey(0)
    kx, kp, kx2, kx3 = jax.random.split(key, 4)
    params = init_params(kp, XDIM, ENC_H, ZDIM, PRED_H, YDIM)

    # 1) tiny batch, f32 end-to-end, exact sigmoid (single full-extent block)
    x = jax.random.normal(kx, (B, XDIM), jnp.float32)
    y = jax.block_until_ready(laftr_forward_y(x, params))
    y_ref = laftr_forward_y_ref(x, params)
    assert y.shape == (B, YDIM)
    assert jnp.max(jnp.abs(y - y_ref)) < 1e-4, float(jnp.max(jnp.abs(y - y_ref)))

    # 2) batch not a multiple of the tile: exercises the cdiv grid + masked ragged
    #    last block (no wrapper-side padding of x anymore)
    B2 = 200
    x2 = jax.random.normal(kx2, (B2, XDIM), jnp.float32)
    y2 = jax.block_until_ready(laftr_forward_y(x2, params, batch_tile=128))
    y2_ref = laftr_forward_y_ref(x2, params)
    assert y2.shape == (B2, YDIM)
    assert jnp.max(jnp.abs(y2 - y2_ref)) < 1e-4, float(jnp.max(jnp.abs(y2 - y2_ref)))

    # 3) larger batch, adaptive tile selection (>= 2 grid steps -> both v7x cores)
    B3 = 4096
    x3 = jax.random.normal(kx3, (B3, XDIM), jnp.float32)
    y3 = jax.block_until_ready(laftr_forward_y(x3, params))
    y3_ref = laftr_forward_y_ref(x3, params)
    assert y3.shape == (B3, YDIM)
    assert jnp.max(jnp.abs(y3 - y3_ref)) < 1e-4, float(jnp.max(jnp.abs(y3 - y3_ref)))

    # 4) opt-in bf16 matmul operands (weights cast in wrapper, x cast in-kernel;
    #    f32 accumulation / bias / ReLU / sigmoid) -> loose tolerance by design
    y4 = jax.block_until_ready(laftr_forward_y(x3, params, matmul_dtype=jnp.bfloat16))
    assert jnp.max(jnp.abs(y4 - y3_ref)) < 3e-2, float(jnp.max(jnp.abs(y4 - y3_ref)))

    # TODO(synk): loss_prediction / loss_audit / weight_pred / weight_audit
    # (pandas-based) are training-time utilities, and forward_s is the audit
    # head not invoked by forward(); not implemented in-kernel.
    print("KERNEL_OK")
</pallas_src>

<mosaic_0001>
module attributes {stable_mosaic.version = 11 : i64} {
  func.func @_laftr_forward_y_kernel(%arg0: i32, %arg1: memref<8x16xf32, #tpu.memory_space<vmem>>, %arg2: memref<32x16xf32, #tpu.memory_space<vmem>>, %arg3: memref<32x1xf32, #tpu.memory_space<vmem>>, %arg4: memref<8x32xf32, #tpu.memory_space<vmem>>, %arg5: memref<8x1xf32, #tpu.memory_space<vmem>>, %arg6: memref<32x8xf32, #tpu.memory_space<vmem>>, %arg7: memref<32x1xf32, #tpu.memory_space<vmem>>, %arg8: memref<1x32xf32, #tpu.memory_space<vmem>>, %arg9: memref<1x1xf32, #tpu.memory_space<vmem>>, %arg10: memref<1x8xf32, #tpu.memory_space<vmem>>) attributes {dimension_semantics = [#tpu.dimension_semantics<parallel>], iteration_bounds = array<i64: 1>, scalar_prefetch = 0 : i64, scratch_operands = 0 : i64, tpu.core_type = #tpu.core_type<tc>, window_params = [{transform_indices = @transform_0, window_bounds = array<i64: 8, 16>}, {pipeline_mode = #tpu.pipeline_mode<synchronous>, transform_indices = @transform_1, window_bounds = array<i64: 32, 16>}, {pipeline_mode = #tpu.pipeline_mode<synchronous>, transform_indices = @transform_2, window_bounds = array<i64: 32, 1>}, {pipeline_mode = #tpu.pipeline_mode<synchronous>, transform_indices = @transform_3, window_bounds = array<i64: 8, 32>}, {pipeline_mode = #tpu.pipeline_mode<synchronous>, transform_indices = @transform_4, window_bounds = array<i64: 8, 1>}, {pipeline_mode = #tpu.pipeline_mode<synchronous>, transform_indices = @transform_5, window_bounds = array<i64: 32, 8>}, {pipeline_mode = #tpu.pipeline_mode<synchronous>, transform_indices = @transform_6, window_bounds = array<i64: 32, 1>}, {pipeline_mode = #tpu.pipeline_mode<synchronous>, transform_indices = @transform_7, window_bounds = array<i64: 1, 32>}, {pipeline_mode = #tpu.pipeline_mode<synchronous>, transform_indices = @transform_8, window_bounds = array<i64: 1, 1>}, {transform_indices = @transform_9, window_bounds = array<i64: 1, 8>}]} {
    %c0 = arith.constant 0 : index
    %c0_0 = arith.constant 0 : index
    %0 = vector.load %arg1[%c0, %c0_0] : memref<8x16xf32, #tpu.memory_space<vmem>>, vector<8x16xf32>
    %c0_1 = arith.constant 0 : index
    %c0_2 = arith.constant 0 : index
    %1 = vector.load %arg2[%c0_1, %c0_2] : memref<32x16xf32, #tpu.memory_space<vmem>>, vector<32x16xf32>
    %cst = arith.constant dense<0.000000e+00> : vector<32x8xf32>
    %2 = tpu.matmul %1, %0, %cst {dimension_numbers = #tpu.dot_dimension_numbers<[1], [1], [0], [0], [0, 0, 1, 0], [], []>} : vector<32x16xf32>, vector<8x16xf32>, vector<32x8xf32> -> vector<32x8xf32>
    %c0_3 = arith.constant 0 : index
    %c0_4 = arith.constant 0 : index
    %3 = vector.load %arg3[%c0_3, %c0_4] : memref<32x1xf32, #tpu.memory_space<vmem>>, vector<32x1xf32>
    %4 = vector.broadcast %3 : vector<32x1xf32> to vector<32x8xf32>
    %5 = arith.addf %2, %4 : vector<32x8xf32>
    %cst_5 = arith.constant 0.000000e+00 : f32
    %6 = vector.broadcast %cst_5 : f32 to vector<32x8xf32>
    %7 = arith.maximumf %5, %6 : vector<32x8xf32>
    %c0_6 = arith.constant 0 : index
    %c0_7 = arith.constant 0 : index
    %8 = vector.load %arg4[%c0_6, %c0_7] : memref<8x32xf32, #tpu.memory_space<vmem>>, vector<8x32xf32>
    %cst_8 = arith.constant dense<0.000000e+00> : vector<8x8xf32>
    %9 = tpu.matmul %8, %7, %cst_8 {dimension_numbers = #tpu.dot_dimension_numbers<[1], [0], [0], [1], [0, 0, 1, 1], [], []>} : vector<8x32xf32>, vector<32x8xf32>, vector<8x8xf32> -> vector<8x8xf32>
    %c0_9 = arith.constant 0 : index
    %c0_10 = arith.constant 0 : index
    %10 = vector.load %arg5[%c0_9, %c0_10] : memref<8x1xf32, #tpu.memory_space<vmem>>, vector<8x1xf32>
    %11 = vector.broadcast %10 : vector<8x1xf32> to vector<8x8xf32>
    %12 = arith.addf %9, %11 : vector<8x8xf32>
    %cst_11 = arith.constant 0.000000e+00 : f32
    %13 = vector.broadcast %cst_11 : f32 to vector<8x8xf32>
    %14 = arith.maximumf %12, %13 : vector<8x8xf32>
    %c0_12 = arith.constant 0 : index
    %c0_13 = arith.constant 0 : index
    %15 = vector.load %arg6[%c0_12, %c0_13] : memref<32x8xf32, #tpu.memory_space<vmem>>, vector<32x8xf32>
    %cst_14 = arith.constant dense<0.000000e+00> : vector<32x8xf32>
    %16 = tpu.matmul %15, %14, %cst_14 {dimension_numbers = #tpu.dot_dimension_numbers<[1], [0], [0], [1], [0, 0, 1, 1], [], []>} : vector<32x8xf32>, vector<8x8xf32>, vector<32x8xf32> -> vector<32x8xf32>
    %c0_15 = arith.constant 0 : index
    %c0_16 = arith.constant 0 : index
    %17 = vector.load %arg7[%c0_15, %c0_16] : memref<32x1xf32, #tpu.memory_space<vmem>>, vector<32x1xf32>
    %18 = vector.broadcast %17 : vector<32x1xf32> to vector<32x8xf32>
    %19 = arith.addf %16, %18 : vector<32x8xf32>
    %cst_17 = arith.constant 0.000000e+00 : f32
    %20 = vector.broadcast %cst_17 : f32 to vector<32x8xf32>
    %21 = arith.maximumf %19, %20 : vector<32x8xf32>
    %c0_18 = arith.constant 0 : index
    %c0_19 = arith.constant 0 : index
    %22 = vector.load %arg8[%c0_18, %c0_19] : memref<1x32xf32, #tpu.memory_space<vmem>>, vector<1x32xf32>
    %cst_20 = arith.constant dense<0.000000e+00> : vector<1x8xf32>
    %23 = tpu.matmul %22, %21, %cst_20 {dimension_numbers = #tpu.dot_dimension_numbers<[1], [0], [0], [1], [0, 0, 1, 1], [], []>} : vector<1x32xf32>, vector<32x8xf32>, vector<1x8xf32> -> vector<1x8xf32>
    %c0_21 = arith.constant 0 : index
    %c0_22 = arith.constant 0 : index
    %24 = vector.load %arg9[%c0_21, %c0_22] : memref<1x1xf32, #tpu.memory_space<vmem>>, vector<1x1xf32>
    %25 = vector.broadcast %24 : vector<1x1xf32> to vector<1x8xf32>
    %26 = arith.addf %23, %25 : vector<1x8xf32>
    %cst_23 = arith.constant 0.000000e+00 : f32
    %27 = vector.broadcast %cst_23 : f32 to vector<1x8xf32>
    %28 = arith.subf %27, %26 : vector<1x8xf32>
    %29 = math.exp %28 : vector<1x8xf32>
    %cst_24 = arith.constant 1.000000e+00 : f32
    %30 = vector.broadcast %cst_24 : f32 to vector<1x8xf32>
    %31 = arith.addf %30, %29 : vector<1x8xf32>
    %cst_25 = arith.constant 1.000000e+00 : f32
    %32 = vector.broadcast %cst_25 : f32 to vector<1x8xf32>
    %33 = arith.divf %32, %31 : vector<1x8xf32>
    %c0_26 = arith.constant 0 : index
    %c0_27 = arith.constant 0 : index
    %34 = vector.load %arg10[%c0_26, %c0_27] : memref<1x8xf32, #tpu.memory_space<vmem>>, vector<1x8xf32>
    tpu.vector_store %arg10[%c0_26, %c0_27], %33 {strides = array<i32>} : memref<1x8xf32, #tpu.memory_space<vmem>>, vector<1x8xf32>,
    return
  }
  func.func @transform_0(%arg0: i32) -> (i32, i32) {
    %c0_i32 = arith.constant 0 : i32
    %c0_i32_0 = arith.constant 0 : i32
    return %arg0, %c0_i32 : i32, i32
  }
  func.func @transform_1(%arg0: i32) -> (i32, i32) {
    %c0_i32 = arith.constant 0 : i32
    %c0_i32_0 = arith.constant 0 : i32
    %c0_i32_1 = arith.constant 0 : i32
    return %c0_i32, %c0_i32_0 : i32, i32
  }
  func.func @transform_2(%arg0: i32) -> (i32, i32) {
    %c0_i32 = arith.constant 0 : i32
    %c0_i32_0 = arith.constant 0 : i32
    %c0_i32_1 = arith.constant 0 : i32
    return %c0_i32, %c0_i32_0 : i32, i32
  }
  func.func @transform_3(%arg0: i32) -> (i32, i32) {
    %c0_i32 = arith.constant 0 : i32
    %c0_i32_0 = arith.constant 0 : i32
    %c0_i32_1 = arith.constant 0 : i32
    return %c0_i32, %c0_i32_0 : i32, i32
  }
  func.func @transform_4(%arg0: i32) -> (i32, i32) {
    %c0_i32 = arith.constant 0 : i32
    %c0_i32_0 = arith.constant 0 : i32
    %c0_i32_1 = arith.constant 0 : i32
    return %c0_i32, %c0_i32_0 : i32, i32
  }
  func.func @transform_5(%arg0: i32) -> (i32, i32) {
    %c0_i32 = arith.constant 0 : i32
    %c0_i32_0 = arith.constant 0 : i32
    %c0_i32_1 = arith.constant 0 : i32
    return %c0_i32, %c0_i32_0 : i32, i32
  }
  func.func @transform_6(%arg0: i32) -> (i32, i32) {
    %c0_i32 = arith.constant 0 : i32
    %c0_i32_0 = arith.constant 0 : i32
    %c0_i32_1 = arith.constant 0 : i32
    return %c0_i32, %c0_i32_0 : i32, i32
  }
  func.func @transform_7(%arg0: i32) -> (i32, i32) {
    %c0_i32 = arith.constant 0 : i32
    %c0_i32_0 = arith.constant 0 : i32
    %c0_i32_1 = arith.constant 0 : i32
    return %c0_i32, %c0_i32_0 : i32, i32
  }
  func.func @transform_8(%arg0: i32) -> (i32, i32) {
    %c0_i32 = arith.constant 0 : i32
    %c0_i32_0 = arith.constant 0 : i32
    %c0_i32_1 = arith.constant 0 : i32
    return %c0_i32, %c0_i32_0 : i32, i32
  }
  func.func @transform_9(%arg0: i32) -> (i32, i32) {
    %c0_i32 = arith.constant 0 : i32
    %c0_i32_0 = arith.constant 0 : i32
    return %c0_i32, %arg0 : i32, i32
  }
}

</mosaic_0001>

<llo_original>
// kernel: tpu_custom_call.1
$region0: #{tpu_custom_call.1}
  #allocation0 [shape = 'u32[]', space=smem, size = 0x4, offset = 0x4, fixed_abs, tag = 'smem constant byte address 0x4 - core index']
  #allocation1 [shape = 'u32[72,128]{1,0:T(1,128)}', space=vmem, size = 0x9000, scoped, tag = 'internal scratch']
  #allocation2 [shape = 'f32[1,1]{1,0:T(1,128)S(1)}', space=vmem, size = 0x200, scoped, tag = 'scoped memory for tpu_custom_call.1']
  %s0 = inlined_call_operand.vmem [shape: f32[8,16], index: 0, kind: input, shape index: {}]
  %s1 = inlined_call_operand.vmem [shape: f32[32,16], index: 1, kind: input, shape index: {}]
  %s2 = inlined_call_operand.vmem [shape: f32[32,1], index: 2, kind: input, shape index: {}]
  %s3 = inlined_call_operand.vmem [shape: f32[8,32], index: 3, kind: input, shape index: {}]
  %s4 = inlined_call_operand.vmem [shape: f32[8,1], index: 4, kind: input, shape index: {}]
  %s5 = inlined_call_operand.vmem [shape: f32[32,8], index: 5, kind: input, shape index: {}]
  %s6 = inlined_call_operand.vmem [shape: f32[32,1], index: 6, kind: input, shape index: {}]
  %s7 = inlined_call_operand.vmem [shape: f32[1,32], index: 7, kind: input, shape index: {}]
  %s8 = inlined_call_operand.<no memory space> [shape: f32[1,1], index: 8, kind: input, shape index: {}]
  %s9 = inlined_call_operand.hbm [shape: f32[1,8], index: 9, kind: output, shape index: {}]
  %s10 = sld [smem:[#allocation0]]
  $region46: #{tpu_custom_call.1} parent=0
    _
  %s12 = ssub.s32 1, %s10
  %s13 = scalar_select 0, %s12, %s10
  %v14 = vstv %s8
  %15 = vst [vmem:[#allocation2] sm:$0x1] %v14
  $region1: #{tpu_custom_call.1} parent=0
    #allocation3 [shape = 'u8[512]{0}', space=vmem, size = 0x400, scoped, tag = 'output window, operand 0, single buffered']
    #allocation4 [shape = 's32[1]{0}', space=sflag, size = 0x4, scoped, tag = 'scoped memory for tpu_custom_call.1']
    %16 = vsyncpa [#allocation4], 0
    // Predicated region
    $region2: #{tpu_custom_call.1} parent=1 // pred_check
      _
    $region3: #{tpu_custom_call.1} parent=1 // pred_check_branch
      %18 = sbr.rel (0) target = $region5
    $region4: #{tpu_custom_call.1} parent=1 // pred_region
      _
    $region5: #{tpu_custom_call.1} parent=1 // pred_fallthru
      _
    // Predicated region
    $region6: #{tpu_custom_call.1} parent=1 // pred_check
      _
    $region7: #{tpu_custom_call.1} parent=1 // pred_check_branch
      %20 = sbr.rel (0) target = $region9
    $region8: #{tpu_custom_call.1} parent=1 // pred_region
      _
    $region9: #{tpu_custom_call.1} parent=1 // pred_fallthru
      _
    // Predicated region
    $region10: #{tpu_custom_call.1} parent=1 // pred_check
      _
    $region11: #{tpu_custom_call.1} parent=1 // pred_check_branch
      %22 = sbr.rel (0) target = $region13
    $region12: #{tpu_custom_call.1} parent=1 // pred_region
      _
    $region13: #{tpu_custom_call.1} parent=1 // pred_fallthru
      _
    // Predicated region
    $region14: #{tpu_custom_call.1} parent=1 // pred_check
      _
    $region15: #{tpu_custom_call.1} parent=1 // pred_check_branch
      %24 = sbr.rel (0) target = $region17
    $region16: #{tpu_custom_call.1} parent=1 // pred_region
      _
    $region17: #{tpu_custom_call.1} parent=1 // pred_fallthru
      _
    // Predicated region
    $region18: #{tpu_custom_call.1} parent=1 // pred_check
      _
    $region19: #{tpu_custom_call.1} parent=1 // pred_check_branch
      %26 = sbr.rel (0) target = $region21
    $region20: #{tpu_custom_call.1} parent=1 // pred_region
      _
    $region21: #{tpu_custom_call.1} parent=1 // pred_fallthru
      _
    // Predicated region
    $region22: #{tpu_custom_call.1} parent=1 // pred_check
      _
    $region23: #{tpu_custom_call.1} parent=1 // pred_check_branch
      %28 = sbr.rel (0) target = $region25
    $region24: #{tpu_custom_call.1} parent=1 // pred_region
      _
    $region25: #{tpu_custom_call.1} parent=1 // pred_fallthru
      _
    // Predicated region
    $region26: #{tpu_custom_call.1} parent=1 // pred_check
      _
    $region27: #{tpu_custom_call.1} parent=1 // pred_check_branch
      %30 = sbr.rel (0) target = $region29
    $region28: #{tpu_custom_call.1} parent=1 // pred_region
      _
    $region29: #{tpu_custom_call.1} parent=1 // pred_fallthru
      _
    // Predicated region
    $region30: #{tpu_custom_call.1} parent=1 // pred_check
      _
    $region31: #{tpu_custom_call.1} parent=1 // pred_check_branch
      %32 = sbr.rel (0) target = $region33
    $region32: #{tpu_custom_call.1} parent=1 // pred_region
      _
    $region33: #{tpu_custom_call.1} parent=1 // pred_fallthru
      _
    // Predicated region
    $region34: #{tpu_custom_call.1} parent=1 // pred_check
      _
    $region35: #{tpu_custom_call.1} parent=1 // pred_check_branch
      %34 = sbr.rel (0) target = $region37
    $region36: #{tpu_custom_call.1} parent=1 // pred_region
      _
    $region37: #{tpu_custom_call.1} parent=1 // pred_fallthru
      _
    %v35 = vld [vmem:[%s0] sm:$0xff]
    %v36 = vld [vmem:[%s1] sm:$0xff]
    %v37 = vld [vmem:[%s1 + $0x8] sm:$0xff]
    %v38 = vld [vmem:[%s1 + $0x10] sm:$0xff]
    %v39 = vld [vmem:[%s1 + $0x18] sm:$0xff]
    %v40 = vld [vmem:[%s2] sm:$0xff]
    %v41 = vld [vmem:[%s2 + $0x8] sm:$0xff]
    %v42 = vld [vmem:[%s2 + $0x10] sm:$0xff]
    %v43 = vld [vmem:[%s2 + $0x18] sm:$0xff]
    %45 = vset.pattern.permute.xlu0 0
    %46 = vperm.xlu0 %45, %v40
    %v47 = vpop.permute.xlu0 %46
    %50 = vset.pattern.permute.xlu0 0
    %51 = vperm.xlu0 %50, %v41
    %v52 = vpop.permute.xlu0 %51
    %55 = vset.pattern.permute.xlu0 0
    %56 = vperm.xlu0 %55, %v42
    %v57 = vpop.permute.xlu0 %56
    %60 = vset.pattern.permute.xlu0 0
    %61 = vperm.xlu0 %60, %v43
    %v62 = vpop.permute.xlu0 %61
    %vm64 = vcmask 130048
    %v66 = vsel %vm64, %v36, 0
    %v69 = vsel %vm64, %v37, 0
    %v72 = vsel %vm64, %v38, 0
    %v75 = vsel %vm64, %v39, 0
    %v78 = vsel %vm64, %v35, 0
    %80 = vmatpush.xpose.msra.mxu0 0.0
    %81 = vmatpush.xpose.msra.mxu0 0.0
    %82 = vmatpush.xpose.msra.mxu0 0.0
    %83 = vmatpush.xpose.msra.mxu0 0.0
    %84 = vmatpush.xpose.msra.mxu0 0.0
    %85 = vmatpush.xpose.msra.mxu0 0.0
    %86 = vmatpush.xpose.msra.mxu0 0.0
    %87 = vmatpush.xpose.msra.mxu0 0.0
    %88 = vmatpush.xpose.msra.mxu0 0.0
    %89 = vmatpush.xpose.msra.mxu0 0.0
    %90 = vmatpush.xpose.msra.mxu0 0.0
    %91 = vmatpush.xpose.msra.mxu0 0.0
    %92 = vmatpush.xpose.msra.mxu0 0.0
    %93 = vmatpush.xpose.msra.mxu0 0.0
    %94 = vmatpush.xpose.msra.mxu0 0.0
    %95 = vmatpush.xpose.msra.mxu0 %v78
    %96 = vmatmul.f32.gmra.mxu0 %v66
    %v97 = vpop.f32.mrf.mxu0
    %v98 = vadd.f32 %v47, %v97
    %99 = vmatmul.f32.gmra.mxu0 %v69
    %v100 = vpop.f32.mrf.mxu0
    %v101 = vadd.f32 %v52, %v100
    %102 = vmatmul.f32.gmra.mxu0 %v72
    %v103 = vpop.f32.mrf.mxu0
    %v104 = vadd.f32 %v57, %v103
    %105 = vmatmul.f32.gmra.mxu0 %v75
    %v106 = vpop.f32.mrf.mxu0
    %v107 = vadd.f32 %v62, %v106
    %108 = vdwg.mxu0
    %v109 = vmax.f32 %v98, 0.0
    %v110 = vmax.f32 %v101, 0.0
    %v111 = vmax.f32 %v104, 0.0
    %v112 = vmax.f32 %v107, 0.0
    %v113 = vld [vmem:[%s3] sm:$0xff]
    %v114 = vld [vmem:[%s4] sm:$0xff]
    %116 = vset.pattern.permute.xlu0 0
    %117 = vperm.xlu0 %116, %v114
    %v118 = vpop.permute.xlu0 %117
    %vm120 = vcmask 261120
    %v122 = vsel %vm120, %v113, 0
    %124 = vmatpush.msra.mxu0 0.0
    %125 = vmatpush.msra.mxu0 0.0
    %126 = vmatpush.msra.mxu0 0.0
    %127 = vmatpush.msra.mxu0 0.0
    %128 = vmatpush.msra.mxu0 0.0
    %129 = vmatpush.msra.mxu0 0.0
    %130 = vmatpush.msra.mxu0 0.0
    %131 = vmatpush.msra.mxu0 0.0
    %132 = vmatpush.msra.mxu0 0.0
    %133 = vmatpush.msra.mxu0 0.0
    %134 = vmatpush.msra.mxu0 0.0
    %135 = vmatpush.msra.mxu0 0.0
    %136 = vmatpush.msra.mxu0 %v112
    %137 = vmatpush.msra.mxu0 %v111
    %138 = vmatpush.msra.mxu0 %v110
    %139 = vmatpush.msra.mxu0 %v109
    %140 = vmatmul.f32.gmra.mxu0 %v122
    %v141 = vpop.f32.mrf.mxu0
    %v142 = vadd.f32 %v118, %v141
    %143 = vdwg.mxu0
    %v144 = vmax.f32 %v142, 0.0
    %v145 = vld [vmem:[%s5] sm:$0xff]
    %v146 = vld [vmem:[%s5 + $0x8] sm:$0xff]
    %v147 = vld [vmem:[%s5 + $0x10] sm:$0xff]
    %v148 = vld [vmem:[%s5 + $0x18] sm:$0xff]
    %v149 = vld [vmem:[%s6] sm:$0xff]
    %v150 = vld [vmem:[%s6 + $0x8] sm:$0xff]
    %v151 = vld [vmem:[%s6 + $0x10] sm:$0xff]
    %v152 = vld [vmem:[%s6 + $0x18] sm:$0xff]
    %154 = vset.pattern.permute.xlu0 0
    %155 = vperm.xlu0 %154, %v149
    %v156 = vpop.permute.xlu0 %155
    %159 = vset.pattern.permute.xlu0 0
    %160 = vperm.xlu0 %159, %v150
    %v161 = vpop.permute.xlu0 %160
    %164 = vset.pattern.permute.xlu0 0
    %165 = vperm.xlu0 %164, %v151
    %v166 = vpop.permute.xlu0 %165
    %169 = vset.pattern.permute.xlu0 0
    %170 = vperm.xlu0 %169, %v152
    %v171 = vpop.permute.xlu0 %170
    %vm173 = vcmask 64512
    %v175 = vsel %vm173, %v145, 0
    %v178 = vsel %vm173, %v146, 0
    %v181 = vsel %vm173, %v147, 0
    %v184 = vsel %vm173, %v148, 0
    %186 = vmatpush.msra.mxu0 0.0
    %187 = vmatpush.msra.mxu0 0.0
    %188 = vmatpush.msra.mxu0 0.0
    %189 = vmatpush.msra.mxu0 0.0
    %190 = vmatpush.msra.mxu0 0.0
    %191 = vmatpush.msra.mxu0 0.0
    %192 = vmatpush.msra.mxu0 0.0
    %193 = vmatpush.msra.mxu0 0.0
    %194 = vmatpush.msra.mxu0 0.0
    %195 = vmatpush.msra.mxu0 0.0
    %196 = vmatpush.msra.mxu0 0.0
    %197 = vmatpush.msra.mxu0 0.0
    %198 = vmatpush.msra.mxu0 0.0
    %199 = vmatpush.msra.mxu0 0.0
    %200 = vmatpush.msra.mxu0 0.0
    %201 = vmatpush.msra.mxu0 %v144
    %202 = vmatmul.f32.gmra.mxu0 %v175
    %v203 = vpop.f32.mrf.mxu0
    %v204 = vadd.f32 %v156, %v203
    %205 = vmatmul.f32.gmra.mxu0 %v178
    %v206 = vpop.f32.mrf.mxu0
    %v207 = vadd.f32 %v161, %v206
    %208 = vmatmul.f32.gmra.mxu0 %v181
    %v209 = vpop.f32.mrf.mxu0
    %v210 = vadd.f32 %v166, %v209
    %211 = vmatmul.f32.gmra.mxu0 %v184
    %v212 = vpop.f32.mrf.mxu0
    %v213 = vadd.f32 %v171, %v212
    %214 = vdwg.mxu0
    %v215 = vmax.f32 %v204, 0.0
    %v216 = vmax.f32 %v207, 0.0
    %v217 = vmax.f32 %v210, 0.0
    %v218 = vmax.f32 %v213, 0.0
    %v219 = vld [vmem:[%s7] sm:$0x1]
    %v220 = vld [vmem:[#allocation2] sm:$0x1]
    %222 = vset.pattern.permute.xlu0 0
    %223 = vperm.xlu0 %222, %v220
    %v224 = vpop.permute.xlu0 %223
    %v226 = vperm.slane %v224, 0
    %v228 = vsel %vm120, %v219, 0
    %230 = vmatpush.msra.mxu0 0.0
    %231 = vmatpush.msra.mxu0 0.0
    %232 = vmatpush.msra.mxu0 0.0
    %233 = vmatpush.msra.mxu0 0.0
    %234 = vmatpush.msra.mxu0 0.0
    %235 = vmatpush.msra.mxu0 0.0
    %236 = vmatpush.msra.mxu0 0.0
    %237 = vmatpush.msra.mxu0 0.0
    %238 = vmatpush.msra.mxu0 0.0
    %239 = vmatpush.msra.mxu0 0.0
    %240 = vmatpush.msra.mxu0 0.0
    %241 = vmatpush.msra.mxu0 0.0
    %242 = vmatpush.msra.mxu0 %v218
    %243 = vmatpush.msra.mxu0 %v217
    %244 = vmatpush.msra.mxu0 %v216
    %245 = vmatpush.msra.mxu0 %v215
    %246 = vmatmul.f32.gmra.mxu0 %v228
    %v247 = vpop.f32.mrf.mxu0
    %v248 = vadd.f32 %v226, %v247
    %249 = vdwg.mxu0
    %v250 = vsub.f32 0.0, %v248
    %v251 = vmul.f32 %v250, 1.442695
    %v252 = vpow.pop %v251
    %v253 = vadd.f32 %v252, 1.0
    %v254 = vrcp.pop %v253
    %v255 = vmul.f32 %v253, %v254
    %v256 = vsub.f32 1.0, %v255
    %v257 = vmul.f32 %v254, %v256
    %v258 = vadd.f32 %v254, %v257
    %vm259 = vweird.f32 %v253
    %vm260 = vweird.f32 %v254
    %vm261 = vmor %vm259, %vm260
    %v262 = vsel %vm261, %v254, %v258
    %v263 = vand.u32 2147483647, %v253
    %vm264 = vcmp.eq.f32.partialorder %v263, 8.507059e+37
    %v265 = vand.u32 %v253, 2147483648
    %v266 = vor.u32 1.1754944e-38, %v265
    %v267 = vsel %vm264, %v266, %v262
    %v268 = vmul.f32 1.0, %v267
    %vm269 = vcmask 57344
    %270 = vst.msk [vmem:[#allocation3] sm:$0x1] %vm269, %v268
    // Predicated region
    $region38: #{tpu_custom_call.1} parent=1 // pred_check
      _
    $region39: #{tpu_custom_call.1} parent=1 // pred_check_branch
      %272 = sbr.rel (0) target = $region41
    $region40: #{tpu_custom_call.1} parent=1 // pred_region
      %274 = vsyncadd [#allocation4], 0
      %s276 = sshll.u32 [#allocation3], 4
      %s277 = int_to_ptr.vmem [resolvable:$true] %s276
      %s278 = sshll.u32 %s9, 4
      %s279 = int_to_ptr.hbm [resolvable:$true] %s278
      %281 = dma.vmem_to_hbm [thread:$0]  %s277, 16, %s279, [#allocation4]
    $region41: #{tpu_custom_call.1} parent=1 // pred_fallthru
      _
    // Predicated region
    $region42: #{tpu_custom_call.1} parent=1 // pred_check
      _
    $region43: #{tpu_custom_call.1} parent=1 // pred_check_branch
      %283 = sbr.rel (0) target = $region45
    $region44: #{tpu_custom_call.1} parent=1 // pred_region
      %285 = dma.done [#allocation4], 16
    $region45: #{tpu_custom_call.1} parent=1 // pred_fallthru
      _
    %286 = vsyncpa [#allocation4], 1

</llo_original>
